<compile_context>
chip_gen: v5e
topology: v5e:2x2
jax: 0.10.0
libtpu: 0.0.40
codegen_flags: <defaults>
</compile_context>

<pallas_src>
import functools

import jax
import jax.numpy as jnp
from jax.experimental import pallas as pl
from jax.experimental.pallas import tpu as pltpu


def _round_up(x: int, m: int) -> int:
    return ((x + m - 1) // m) * m


def mlp_kernel(x_ref, w1_ref, b1_ref, w2_ref, b2_ref, o_ref):
    # Linear 1 on the MXU: bf16 operands, f32 accumulation.
    h = jnp.dot(x_ref[...], w1_ref[...], preferred_element_type=jnp.float32)
    h = h + b1_ref[...]                      # f32 epilogue (b1 is (1, P_hid))
    # Sigmoid via the EUP tanh: sigmoid(z) == 0.5 * tanh(0.5 * z) + 0.5
    h = 0.5 * jnp.tanh(0.5 * h) + 0.5
    # Linear 2 on the MXU: bf16 activation, f32 accumulation.
    y = jnp.dot(h.astype(jnp.bfloat16), w2_ref[...],
                preferred_element_type=jnp.float32)
    o_ref[...] = (y + b2_ref[...]).astype(o_ref.dtype)


def prepare_params(w1, b1, w2, b2, lane=128):
    """One-time lane padding + dtype conversion (hoisted out of the call path).

    w1: [D_in, D_hid] (already [in, out] layout), b1: [D_hid],
    w2: [D_hid, D_in], b2: [D_in].
    Padded hidden units get pre-activation 0 -> sigmoid 0.5, but their rows in
    w2p are zero, so real outputs are unaffected; padded output lanes are
    sliced off in the wrapper.
    """
    d_in, d_hid = w1.shape
    p_in, p_hid = _round_up(d_in, lane), _round_up(d_hid, lane)
    w1p = (jnp.zeros((p_in, p_hid), jnp.float32)
           .at[:d_in, :d_hid].set(w1).astype(jnp.bfloat16))
    b1p = jnp.zeros((1, p_hid), jnp.float32).at[0, :d_hid].set(b1)
    w2p = (jnp.zeros((p_hid, p_in), jnp.float32)
           .at[:d_hid, :d_in].set(w2).astype(jnp.bfloat16))
    b2p = jnp.zeros((1, p_in), jnp.float32).at[0, :d_in].set(b2)
    return w1p, b1p, w2p, b2p, d_in


@functools.partial(jax.jit, static_argnames=("d_out",))
def mynet_forward(x, w1p, b1p, w2p, b2p, d_out):
    """myNet forward. x: [B, D_in] -> [B, D_in] float32."""
    x = x.astype(jnp.float32)                # matches inputs.float()
    B, d_in = x.shape
    p_in, p_hid = w1p.shape

    # Pad batch to a multiple of 8 (sublanes) and features to the lane-padded
    # width; MXU operands in bf16.
    bp = _round_up(max(B, 8), 8)
    xp = (jnp.zeros((bp, p_in), jnp.float32)
          .at[:B, :d_in].set(x).astype(jnp.bfloat16))

    flops = 2 * bp * p_in * p_hid + 2 * bp * p_hid * p_in
    bytes_accessed = (xp.size * 2 + w1p.size * 2 + w2p.size * 2
                      + b1p.size * 4 + b2p.size * 4 + bp * p_in * 4)

    out = pl.pallas_call(
        mlp_kernel,
        out_shape=jax.ShapeDtypeStruct((bp, p_in), jnp.float32),
        in_specs=[pl.BlockSpec(memory_space=pltpu.MemorySpace.VMEM)
                  for _ in range(5)],
        out_specs=pl.BlockSpec(memory_space=pltpu.MemorySpace.VMEM),
        cost_estimate=pl.CostEstimate(
            flops=flops, transcendentals=bp * p_hid,
            bytes_accessed=bytes_accessed),
    )(xp, w1p, b1p, w2p, b2p)
    return out[:B, :d_out]


def init_params(key, input_dim, neuron_num):
    """Deterministic init mimicking nn.Linear's U(-1/sqrt(fan_in), 1/sqrt(fan_in))."""
    k1, k2, k3, k4 = jax.random.split(key, 4)
    bound1 = 1.0 / jnp.sqrt(input_dim)
    bound2 = 1.0 / jnp.sqrt(neuron_num)
    # Stored directly in [in, out] layout (transpose of PyTorch's [out, in]).
    w1 = jax.random.uniform(k1, (input_dim, neuron_num), jnp.float32, -bound1, bound1)
    b1 = jax.random.uniform(k2, (neuron_num,), jnp.float32, -bound1, bound1)
    w2 = jax.random.uniform(k3, (neuron_num, input_dim), jnp.float32, -bound2, bound2)
    b2 = jax.random.uniform(k4, (input_dim,), jnp.float32, -bound2, bound2)
    return w1, b1, w2, b2


if __name__ == "__main__":
    key = jax.random.PRNGKey(0)
    k_x, k_p = jax.random.split(key)

    batch = 8
    input_dim = 32          # myNet(input_dim=32)
    neuron_num = input_dim  # neuron_num defaults to input_dim (layer_num == 2)

    x = jax.random.normal(k_x, (batch, input_dim), dtype=jnp.float32)
    w1, b1, w2, b2 = init_params(k_p, input_dim, neuron_num)

    w1p, b1p, w2p, b2p, d_out = prepare_params(w1, b1, w2, b2)

    out = mynet_forward(x, w1p, b1p, w2p, b2p, d_out)
    out = jax.block_until_ready(out)

    hi = jax.lax.Precision.HIGHEST

    # Tight check: same math with the same bf16 rounding of MXU operands.
    xb = x.astype(jnp.bfloat16).astype(jnp.float32)
    w1b = w1p[:input_dim, :neuron_num].astype(jnp.float32)
    w2b = w2p[:neuron_num, :input_dim].astype(jnp.float32)
    h = jax.nn.sigmoid(jnp.dot(xb, w1b, precision=hi) + b1)
    hb = h.astype(jnp.bfloat16).astype(jnp.float32)
    ref_q = jnp.dot(hb, w2b, precision=hi) + b2
    assert jnp.allclose(out, ref_q, atol=5e-3, rtol=5e-3), "mismatch vs quantized reference"

    # Loose sanity check against the plain f32 module semantics.
    ref = jnp.dot(jax.nn.sigmoid(jnp.dot(x, w1, precision=hi) + b1), w2,
                  precision=hi) + b2
    assert jnp.allclose(out, ref, atol=5e-2, rtol=5e-2), "mismatch vs f32 reference"

    print("KERNEL_OK")
</pallas_src>

<mosaic_0001>
module attributes {stable_mosaic.version = 11 : i64} {
  func.func @mlp_kernel(%arg0: memref<8x128xbf16, #tpu.memory_space<vmem>>, %arg1: memref<128x128xbf16, #tpu.memory_space<vmem>>, %arg2: memref<1x128xf32, #tpu.memory_space<vmem>>, %arg3: memref<128x128xbf16, #tpu.memory_space<vmem>>, %arg4: memref<1x128xf32, #tpu.memory_space<vmem>>, %arg5: memref<8x128xf32, #tpu.memory_space<vmem>>) attributes {dimension_semantics = [], scalar_prefetch = 0 : i64, scratch_operands = 0 : i64, tpu.core_type = #tpu.core_type<tc>} {
    %c0 = arith.constant 0 : index
    %c0_0 = arith.constant 0 : index
    %0 = vector.load %arg0[%c0, %c0_0] : memref<8x128xbf16, #tpu.memory_space<vmem>>, vector<8x128xbf16>
    %c0_1 = arith.constant 0 : index
    %c0_2 = arith.constant 0 : index
    %1 = vector.load %arg1[%c0_1, %c0_2] : memref<128x128xbf16, #tpu.memory_space<vmem>>, vector<128x128xbf16>
    %cst = arith.constant dense<0.000000e+00> : vector<8x128xf32>
    %2 = tpu.matmul %0, %1, %cst {dimension_numbers = #tpu.dot_dimension_numbers<[1], [0], [0], [1], [0, 0, 1, 1], [], []>} : vector<8x128xbf16>, vector<128x128xbf16>, vector<8x128xf32> -> vector<8x128xf32>
    %c0_3 = arith.constant 0 : index
    %c0_4 = arith.constant 0 : index
    %3 = vector.load %arg2[%c0_3, %c0_4] : memref<1x128xf32, #tpu.memory_space<vmem>>, vector<1x128xf32>
    %4 = vector.broadcast %3 : vector<1x128xf32> to vector<8x128xf32>
    %5 = arith.addf %2, %4 : vector<8x128xf32>
    %cst_5 = arith.constant 5.000000e-01 : f32
    %6 = vector.broadcast %cst_5 : f32 to vector<8x128xf32>
    %7 = arith.mulf %6, %5 : vector<8x128xf32>
    %8 = math.tanh %7 : vector<8x128xf32>
    %cst_6 = arith.constant 5.000000e-01 : f32
    %9 = vector.broadcast %cst_6 : f32 to vector<8x128xf32>
    %10 = arith.mulf %9, %8 : vector<8x128xf32>
    %cst_7 = arith.constant 5.000000e-01 : f32
    %11 = vector.broadcast %cst_7 : f32 to vector<8x128xf32>
    %12 = arith.addf %10, %11 : vector<8x128xf32>
    %13 = arith.truncf %12 : vector<8x128xf32> to vector<8x128xbf16>
    %c0_8 = arith.constant 0 : index
    %c0_9 = arith.constant 0 : index
    %14 = vector.load %arg3[%c0_8, %c0_9] : memref<128x128xbf16, #tpu.memory_space<vmem>>, vector<128x128xbf16>
    %cst_10 = arith.constant dense<0.000000e+00> : vector<8x128xf32>
    %15 = tpu.matmul %13, %14, %cst_10 {dimension_numbers = #tpu.dot_dimension_numbers<[1], [0], [0], [1], [0, 0, 1, 1], [], []>} : vector<8x128xbf16>, vector<128x128xbf16>, vector<8x128xf32> -> vector<8x128xf32>
    %c0_11 = arith.constant 0 : index
    %c0_12 = arith.constant 0 : index
    %16 = vector.load %arg4[%c0_11, %c0_12] : memref<1x128xf32, #tpu.memory_space<vmem>>, vector<1x128xf32>
    %17 = vector.broadcast %16 : vector<1x128xf32> to vector<8x128xf32>
    %18 = arith.addf %15, %17 : vector<8x128xf32>
    %c0_13 = arith.constant 0 : index
    %c0_14 = arith.constant 0 : index
    %19 = vector.load %arg5[%c0_13, %c0_14] : memref<8x128xf32, #tpu.memory_space<vmem>>, vector<8x128xf32>
    tpu.vector_store %arg5[%c0_13, %c0_14], %18 {strides = array<i32>} : memref<8x128xf32, #tpu.memory_space<vmem>>, vector<8x128xf32>,
    return
  }
}

</mosaic_0001>

<llo_original>
// kernel: mynet_forward.1
$region0: #{mynet_forward.1}
  #allocation0 [shape = 'u32[]', space=smem, size = 0x4, offset = 0x4, fixed_abs, tag = 'smem constant byte address 0x4 - core index']
  #allocation1 [shape = 'u32[72,128]{1,0:T(1,128)}', space=vmem, size = 0x9000, scoped, tag = 'internal scratch']
  %s0 = inlined_call_operand.vmem [shape: bf16[8,128], index: 0, kind: input, shape index: {}]
  %s1 = inlined_call_operand.hbm [shape: bf16[128,128], index: 1, kind: input, shape index: {}]
  %s2 = inlined_call_operand.vmem [shape: f32[1,128], index: 2, kind: input, shape index: {}]
  %s3 = inlined_call_operand.hbm [shape: bf16[128,128], index: 3, kind: input, shape index: {}]
  %s4 = inlined_call_operand.vmem [shape: f32[1,128], index: 4, kind: input, shape index: {}]
  %s5 = inlined_call_operand.hbm [shape: f32[8,128], index: 5, kind: output, shape index: {}]
  %s6 = sld [smem:[#allocation0]]
  $region38: #{mynet_forward.1} parent=0
    _
  %s8 = ssub.s32 1, %s6
  %s9 = scalar_select 0, %s8, %s6
  $region1: #{mynet_forward.1} parent=0
    #allocation2 [shape = 'u8[32768]{0}', space=vmem, size = 0x8000, scoped, tag = 'input window, operand 1, single buffered']
    #allocation3 [shape = 's32[1]{0}', space=sflag, size = 0x4, scoped, tag = 'scoped memory for mynet_forward.1']
    #allocation4 [shape = 's32[1]{0}', space=sflag, size = 0x4, scoped, tag = 'scoped memory for mynet_forward.1']
    #allocation5 [shape = 'u8[32768]{0}', space=vmem, size = 0x8000, scoped, tag = 'input window, operand 3, single buffered']
    #allocation6 [shape = 's32[1]{0}', space=sflag, size = 0x4, scoped, tag = 'scoped memory for mynet_forward.1']
    #allocation7 [shape = 'u8[4096]{0}', space=vmem, size = 0x1000, scoped, tag = 'output window, operand 0, single buffered']
    %10 = vsyncpa [#allocation3], 0
    %11 = vsyncpa [#allocation6], 0
    %12 = vsyncpa [#allocation4], 0
    // Predicated region
    $region2: #{mynet_forward.1} parent=1 // pred_check
      _
    $region3: #{mynet_forward.1} parent=1 // pred_check_branch
      %14 = sbr.rel (0) target = $region5
    $region4: #{mynet_forward.1} parent=1 // pred_region
      _
    $region5: #{mynet_forward.1} parent=1 // pred_fallthru
      _
    // Predicated region
    $region6: #{mynet_forward.1} parent=1 // pred_check
      _
    $region7: #{mynet_forward.1} parent=1 // pred_check_branch
      %16 = sbr.rel (0) target = $region9
    $region8: #{mynet_forward.1} parent=1 // pred_region
      %18 = vsyncadd [#allocation3], 0
      %s19 = sshll.u32 %s1, 4
      %s20 = int_to_ptr.hbm [resolvable:$true] %s19
      %s21 = sshll.u32 [#allocation2], 4
      %s22 = int_to_ptr.vmem [resolvable:$true] %s21
      %27 = dma.hbm_to_vmem [thread:$0]  %s20, 1024, %s22, [#allocation3], 64, 64, 4
    $region9: #{mynet_forward.1} parent=1 // pred_fallthru
      _
    // Predicated region
    $region10: #{mynet_forward.1} parent=1 // pred_check
      _
    $region11: #{mynet_forward.1} parent=1 // pred_check_branch
      %29 = sbr.rel (0) target = $region13
    $region12: #{mynet_forward.1} parent=1 // pred_region
      _
    $region13: #{mynet_forward.1} parent=1 // pred_fallthru
      _
    // Predicated region
    $region14: #{mynet_forward.1} parent=1 // pred_check
      _
    $region15: #{mynet_forward.1} parent=1 // pred_check_branch
      %31 = sbr.rel (0) target = $region17
    $region16: #{mynet_forward.1} parent=1 // pred_region
      %33 = vsyncadd [#allocation6], 0
      %s34 = sshll.u32 %s3, 4
      %s35 = int_to_ptr.hbm [resolvable:$true] %s34
      %s36 = sshll.u32 [#allocation5], 4
      %s37 = int_to_ptr.vmem [resolvable:$true] %s36
      %42 = dma.hbm_to_vmem [thread:$0]  %s35, 1024, %s37, [#allocation6], 64, 64, 4
    $region17: #{mynet_forward.1} parent=1 // pred_fallthru
      _
    // Predicated region
    $region18: #{mynet_forward.1} parent=1 // pred_check
      _
    $region19: #{mynet_forward.1} parent=1 // pred_check_branch
      %44 = sbr.rel (0) target = $region21
    $region20: #{mynet_forward.1} parent=1 // pred_region
      _
    $region21: #{mynet_forward.1} parent=1 // pred_fallthru
      _
    // Predicated region
    $region22: #{mynet_forward.1} parent=1 // pred_check
      _
    $region23: #{mynet_forward.1} parent=1 // pred_check_branch
      %46 = sbr.rel (0) target = $region25
    $region24: #{mynet_forward.1} parent=1 // pred_region
      %48 = dma.done [#allocation3], 1024
    $region25: #{mynet_forward.1} parent=1 // pred_fallthru
      _
    // Predicated region
    $region26: #{mynet_forward.1} parent=1 // pred_check
      _
    $region27: #{mynet_forward.1} parent=1 // pred_check_branch
      %50 = sbr.rel (0) target = $region29
    $region28: #{mynet_forward.1} parent=1 // pred_region
      %52 = dma.done [#allocation6], 1024
    $region29: #{mynet_forward.1} parent=1 // pred_fallthru
      _
    %v53 = vld [vmem:[%s0] sm:$0xf]
    %v54 = vld [vmem:[#allocation2] sm:$0xf]
    %v55 = vld [vmem:[#allocation2 + $0x4] sm:$0xf]
    %v56 = vld [vmem:[#allocation2 + $0x8] sm:$0xf]
    %v57 = vld [vmem:[#allocation2 + $0xc] sm:$0xf]
    %v58 = vld [vmem:[#allocation2 + $0x10] sm:$0xf]
    %v59 = vld [vmem:[#allocation2 + $0x14] sm:$0xf]
    %v60 = vld [vmem:[#allocation2 + $0x18] sm:$0xf]
    %v61 = vld [vmem:[#allocation2 + $0x1c] sm:$0xf]
    %v62 = vld [vmem:[#allocation2 + $0x20] sm:$0xf]
    %v63 = vld [vmem:[#allocation2 + $0x24] sm:$0xf]
    %v64 = vld [vmem:[#allocation2 + $0x28] sm:$0xf]
    %v65 = vld [vmem:[#allocation2 + $0x2c] sm:$0xf]
    %v66 = vld [vmem:[#allocation2 + $0x30] sm:$0xf]
    %v67 = vld [vmem:[#allocation2 + $0x34] sm:$0xf]
    %v68 = vld [vmem:[#allocation2 + $0x38] sm:$0xf]
    %v69 = vld [vmem:[#allocation2 + $0x3c] sm:$0xf]
    %v70 = vld [vmem:[%s2] sm:$0x1]
    %v72 = vperm.slane %v70, 0
    %v90 = vunpack.c.l.b16 %v54
    %v91 = vunpack.c.l.b16 %v55
    %v92 = vunpack.c.l.b16 %v56
    %v93 = vunpack.c.l.b16 %v57
    %v94 = vunpack.c.l.b16 %v58
    %v95 = vunpack.c.l.b16 %v59
    %v96 = vunpack.c.l.b16 %v60
    %v97 = vunpack.c.l.b16 %v61
    %v98 = vunpack.c.l.b16 %v62
    %v99 = vunpack.c.l.b16 %v63
    %v100 = vunpack.c.l.b16 %v64
    %v101 = vunpack.c.l.b16 %v65
    %v102 = vunpack.c.l.b16 %v66
    %v103 = vunpack.c.l.b16 %v67
    %v104 = vunpack.c.l.b16 %v68
    %v105 = vunpack.c.l.b16 %v69
    %v106 = vpack.c.b16 %v91, %v90
    %v107 = vpack.c.b16 %v93, %v92
    %v108 = vpack.c.b16 %v95, %v94
    %v109 = vpack.c.b16 %v97, %v96
    %v110 = vpack.c.b16 %v99, %v98
    %v111 = vpack.c.b16 %v101, %v100
    %v112 = vpack.c.b16 %v103, %v102
    %v113 = vpack.c.b16 %v105, %v104
    %122 = vmatpush.bf16.msra.mxu0 %v113
    %123 = vmatpush.bf16.msra.mxu0 %v112
    %124 = vmatpush.bf16.msra.mxu0 %v111
    %125 = vmatpush.bf16.msra.mxu0 %v110
    %126 = vmatpush.bf16.msra.mxu0 %v109
    %127 = vmatpush.bf16.msra.mxu0 %v108
    %128 = vmatpush.bf16.msra.mxu0 %v107
    %129 = vmatpush.bf16.msra.mxu0 %v106
    %130 = vmatmul.bf16.gmra.mxu0 %v53
    %v131 = vpop.f32.mrf.mxu0
    %v132 = vadd.f32 %v72, %v131
    %v133 = vpop.f32.mrf.mxu0
    %134 = vdwg.mxu0
    %v135 = vmul.f32 %v132, 0.5
    %v136 = vtanh.pop %v135
    %v137 = vmul.f32 %v136, 0.5
    %v138 = vadd.f32 %v137, 0.5
    %v139 = vpack.c.bf16 %v138, %v138
    %v140 = vld [vmem:[#allocation5] sm:$0xf]
    %v141 = vld [vmem:[#allocation5 + $0x4] sm:$0xf]
    %v142 = vld [vmem:[#allocation5 + $0x8] sm:$0xf]
    %v143 = vld [vmem:[#allocation5 + $0xc] sm:$0xf]
    %v144 = vld [vmem:[#allocation5 + $0x10] sm:$0xf]
    %v145 = vld [vmem:[#allocation5 + $0x14] sm:$0xf]
    %v146 = vld [vmem:[#allocation5 + $0x18] sm:$0xf]
    %v147 = vld [vmem:[#allocation5 + $0x1c] sm:$0xf]
    %v148 = vld [vmem:[#allocation5 + $0x20] sm:$0xf]
    %v149 = vld [vmem:[#allocation5 + $0x24] sm:$0xf]
    %v150 = vld [vmem:[#allocation5 + $0x28] sm:$0xf]
    %v151 = vld [vmem:[#allocation5 + $0x2c] sm:$0xf]
    %v152 = vld [vmem:[#allocation5 + $0x30] sm:$0xf]
    %v153 = vld [vmem:[#allocation5 + $0x34] sm:$0xf]
    %v154 = vld [vmem:[#allocation5 + $0x38] sm:$0xf]
    %v155 = vld [vmem:[#allocation5 + $0x3c] sm:$0xf]
    %v156 = vld [vmem:[%s4] sm:$0x1]
    %v158 = vperm.slane %v156, 0
    %v176 = vunpack.c.l.b16 %v140
    %v177 = vunpack.c.l.b16 %v141
    %v178 = vunpack.c.l.b16 %v142
    %v179 = vunpack.c.l.b16 %v143
    %v180 = vunpack.c.l.b16 %v144
    %v181 = vunpack.c.l.b16 %v145
    %v182 = vunpack.c.l.b16 %v146
    %v183 = vunpack.c.l.b16 %v147
    %v184 = vunpack.c.l.b16 %v148
    %v185 = vunpack.c.l.b16 %v149
    %v186 = vunpack.c.l.b16 %v150
    %v187 = vunpack.c.l.b16 %v151
    %v188 = vunpack.c.l.b16 %v152
    %v189 = vunpack.c.l.b16 %v153
    %v190 = vunpack.c.l.b16 %v154
    %v191 = vunpack.c.l.b16 %v155
    %v192 = vpack.c.b16 %v177, %v176
    %v193 = vpack.c.b16 %v179, %v178
    %v194 = vpack.c.b16 %v181, %v180
    %v195 = vpack.c.b16 %v183, %v182
    %v196 = vpack.c.b16 %v185, %v184
    %v197 = vpack.c.b16 %v187, %v186
    %v198 = vpack.c.b16 %v189, %v188
    %v199 = vpack.c.b16 %v191, %v190
    %208 = vmatpush.bf16.msra.mxu0 %v199
    %209 = vmatpush.bf16.msra.mxu0 %v198
    %210 = vmatpush.bf16.msra.mxu0 %v197
    %211 = vmatpush.bf16.msra.mxu0 %v196
    %212 = vmatpush.bf16.msra.mxu0 %v195
    %213 = vmatpush.bf16.msra.mxu0 %v194
    %214 = vmatpush.bf16.msra.mxu0 %v193
    %215 = vmatpush.bf16.msra.mxu0 %v192
    %216 = vmatmul.bf16.gmra.mxu0 %v139
    %v217 = vpop.f32.mrf.mxu0
    %v218 = vadd.f32 %v158, %v217
    %v219 = vpop.f32.mrf.mxu0
    %220 = vdwg.mxu0
    %221 = vst [vmem:[#allocation7] sm:$0xff] %v218
    // Predicated region
    $region30: #{mynet_forward.1} parent=1 // pred_check
      _
    $region31: #{mynet_forward.1} parent=1 // pred_check_branch
      %223 = sbr.rel (0) target = $region33
    $region32: #{mynet_forward.1} parent=1 // pred_region
      %225 = vsyncadd [#allocation4], 0
      %s227 = sshll.u32 [#allocation7], 4
      %s228 = int_to_ptr.vmem [resolvable:$true] %s227
      %s229 = sshll.u32 %s5, 4
      %s230 = int_to_ptr.hbm [resolvable:$true] %s229
      %232 = dma.vmem_to_hbm [thread:$0]  %s228, 128, %s230, [#allocation4]
    $region33: #{mynet_forward.1} parent=1 // pred_fallthru
      _
    // Predicated region
    $region34: #{mynet_forward.1} parent=1 // pred_check
      _
    $region35: #{mynet_forward.1} parent=1 // pred_check_branch
      %234 = sbr.rel (0) target = $region37
    $region36: #{mynet_forward.1} parent=1 // pred_region
      %236 = dma.done [#allocation4], 128
    $region37: #{mynet_forward.1} parent=1 // pred_fallthru
      _
    %237 = vsyncpa [#allocation3], 1
    %238 = vsyncpa [#allocation6], 1
    %239 = vsyncpa [#allocation4], 1

</llo_original>
